<compile_context>
chip_gen: v7x
topology: tpu7x:2x2x1
jax: 0.10.0
libtpu: 0.0.40
codegen_flags: <defaults>
</compile_context>

<pallas_src>
import functools

import jax
import jax.numpy as jnp
from jax.experimental import pallas as pl
from jax.experimental.pallas import tpu as pltpu

# Fixed decay weights from the PyTorch module -- compile-time constants.
_DECAY_WEIGHTS = (0.19, 0.17, 0.15, 0.13, 0.11, 0.09, 0.07, 0.05, 0.03, 0.01)
_STATE_SIZE = len(_DECAY_WEIGHTS)


def _make_kernel(E, lane_aligned):
    """Build the per-tile kernel for embedding dim E.

    items_ref is the flattened (TB, S*E) slab; each item slot is a static
    lane-range view, so the S=10 weighted accumulation is a chain of VPU
    multiply-adds on (TB, E) vregs with scalar-immediate weights.
    """

    def kernel(user_ref, items_ref, out_ref):
        user = user_ref[...].astype(jnp.float32)                    # (TB, E)

        acc = items_ref[:, 0:E].astype(jnp.float32) * _DECAY_WEIGHTS[0]
        for i in range(1, _STATE_SIZE):
            acc = acc + (
                items_ref[:, i * E:(i + 1) * E].astype(jnp.float32)
                * _DECAY_WEIGHTS[i]
            )

        if lane_aligned:
            # E is a multiple of 128: three unmasked lane-aligned stores,
            # no concatenated (TB, 3E) temporary.
            out_ref[:, :E] = user.astype(out_ref.dtype)
            out_ref[:, E:2 * E] = (user * acc).astype(out_ref.dtype)
            out_ref[:, 2 * E:] = acc.astype(out_ref.dtype)
        else:
            # Narrow E: build the full row once and do a single store.
            out_ref[...] = jnp.concatenate(
                [user, user * acc, acc], axis=-1).astype(out_ref.dtype)

    return kernel


def _reference(user_eb, items_eb):
    """Fused pure-jnp forward (also the tiny-problem fast path)."""
    w = jnp.asarray(_DECAY_WEIGHTS, dtype=jnp.float32)
    avp = jnp.sum(items_eb.astype(jnp.float32) * w[None, :, None], axis=1)
    u = user_eb.astype(jnp.float32)
    return jnp.concatenate([u, u * avp, avp], axis=1)


def drr_ave_state_representation(user_eb, items_eb, *, block_b=None,
                                 force_pallas=False):
    """DRR-Ave state representation.

    user_eb : (B, E) float32/bf16
    items_eb: (B, S=10, E) float32/bf16
    returns : (B, 3E), dtype of user_eb
    """
    B, E = user_eb.shape
    Bi, S, Ei = items_eb.shape
    if S != _STATE_SIZE:
        raise ValueError(f"state_size must be {_STATE_SIZE}, got {S}")
    if Bi != B or Ei != E:
        raise ValueError("user_eb / items_eb shape mismatch")

    out_dtype = user_eb.dtype
    in_isize = jnp.dtype(user_eb.dtype).itemsize
    out_isize = jnp.dtype(out_dtype).itemsize

    # Tiny-problem fast path: below ~1 MiB of total traffic the pallas_call
    # fixed cost dominates -- let XLA's fused elementwise op handle it.
    total_bytes = (user_eb.size + items_eb.size) * in_isize + B * 3 * E * out_isize
    if not force_pallas and total_bytes < (1 << 20):
        return _reference(user_eb, items_eb).astype(out_dtype)

    if block_b is None:
        if B <= 8:
            # Tiny batch: one block whose dims equal the full array dims.
            block_b = B
        else:
            # Double-buffer-aware footprint: 2 buffers per BlockSpec array.
            bytes_per_row = in_isize * (S * E + E) + out_isize * 3 * E
            budget = 20 * 1024 * 1024                      # pipelined footprint
            cap = max(8, budget // (2 * bytes_per_row))
            block_b = min(B, 2048, cap)
            block_b = max(8, (block_b // 8) * 8)
            # Megacore (v7x): make sure the parallel batch axis has >= 2 grid
            # steps so both TensorCores get work. Free on single-TC chips.
            if pl.cdiv(B, block_b) == 1 and B >= 16:
                half = pl.cdiv(B, 2)
                block_b = max(8, ((half + 7) // 8) * 8)

    # Free row-major reshape: (B, S, E) -> (B, S*E) lane-dense slab.
    items_flat = items_eb.reshape(B, S * E)

    grid = (pl.cdiv(B, block_b),)
    kernel = _make_kernel(E, lane_aligned=(E % 128 == 0))

    return pl.pallas_call(
        kernel,
        out_shape=jax.ShapeDtypeStruct((B, 3 * E), out_dtype),
        grid=grid,
        in_specs=[
            pl.BlockSpec((block_b, E), lambda i: (i, 0)),
            pl.BlockSpec((block_b, S * E), lambda i: (i, 0)),
        ],
        out_specs=pl.BlockSpec((block_b, 3 * E), lambda i: (i, 0)),
        compiler_params=pltpu.CompilerParams(
            dimension_semantics=("parallel",),     # batch axis across TCs (v7x)
            vmem_limit_bytes=32 * 1024 * 1024,     # fits v7x scoped, helps v5e
        ),
    )(user_eb, items_flat)
    # TODO(synk): for E < 128 the 3E-wide output row still needs masked partial
    # stores; a (B, 3, E)-shaped output would be lane-denser but changes the
    # module's output layout, so it is not done here.


if __name__ == "__main__":
    key = jax.random.PRNGKey(0)
    k1, k2, k3, k4 = jax.random.split(key, 4)

    # --- Test 1: small demo shapes (B=2, E=32), kernel path forced ---------
    B, E = 2, 32
    user = jax.random.normal(k1, (B, E), dtype=jnp.float32)
    items = jax.random.normal(k2, (B, _STATE_SIZE, E), dtype=jnp.float32)

    out = drr_ave_state_representation(user, items, force_pallas=True)
    out = jax.block_until_ready(out)
    ref = _reference(user, items)
    assert out.shape == (B, 3 * E)
    assert jnp.allclose(out, ref, atol=1e-5, rtol=1e-5)

    # --- Test 2: lane-aligned E and non-multiple batch (partial last tile) --
    B2, E2 = 20, 128
    user2 = jax.random.normal(k3, (B2, E2), dtype=jnp.float32)
    items2 = jax.random.normal(k4, (B2, _STATE_SIZE, E2), dtype=jnp.float32)

    out2 = drr_ave_state_representation(user2, items2, block_b=8,
                                        force_pallas=True)
    out2 = jax.block_until_ready(out2)
    ref2 = _reference(user2, items2)
    assert out2.shape == (B2, 3 * E2)
    assert jnp.allclose(out2, ref2, atol=1e-5, rtol=1e-5)

    print("KERNEL_OK")
</pallas_src>

<mosaic_0001>
module attributes {stable_mosaic.version = 11 : i64} {
  func.func @kernel(%arg0: i32, %arg1: memref<2x32xf32, #tpu.memory_space<vmem>>, %arg2: memref<2x320xf32, #tpu.memory_space<vmem>>, %arg3: memref<2x96xf32, #tpu.memory_space<vmem>>) attributes {dimension_semantics = [#tpu.dimension_semantics<parallel>], iteration_bounds = array<i64: 1>, scalar_prefetch = 0 : i64, scratch_operands = 0 : i64, tpu.core_type = #tpu.core_type<tc>, window_params = [{transform_indices = @transform_0, window_bounds = array<i64: 2, 32>}, {transform_indices = @transform_1, window_bounds = array<i64: 2, 320>}, {transform_indices = @transform_2, window_bounds = array<i64: 2, 96>}]} {
    %c0 = arith.constant 0 : index
    %c0_0 = arith.constant 0 : index
    %0 = vector.load %arg1[%c0, %c0_0] : memref<2x32xf32, #tpu.memory_space<vmem>>, vector<2x32xf32>
    %c0_1 = arith.constant 0 : index
    %c0_2 = arith.constant 0 : index
    %1 = vector.load %arg2[%c0_1, %c0_2] : memref<2x320xf32, #tpu.memory_space<vmem>>, vector<2x32xf32>
    %cst = arith.constant 1.900000e-01 : f32
    %2 = vector.broadcast %cst : f32 to vector<2x32xf32>
    %3 = arith.mulf %1, %2 : vector<2x32xf32>
    %c0_3 = arith.constant 0 : index
    %c32 = arith.constant 32 : index
    %4 = vector.load %arg2[%c0_3, %c32] : memref<2x320xf32, #tpu.memory_space<vmem>>, vector<2x32xf32>
    %cst_4 = arith.constant 1.700000e-01 : f32
    %5 = vector.broadcast %cst_4 : f32 to vector<2x32xf32>
    %6 = arith.mulf %4, %5 : vector<2x32xf32>
    %7 = arith.addf %3, %6 : vector<2x32xf32>
    %c0_5 = arith.constant 0 : index
    %c64 = arith.constant 64 : index
    %8 = vector.load %arg2[%c0_5, %c64] : memref<2x320xf32, #tpu.memory_space<vmem>>, vector<2x32xf32>
    %cst_6 = arith.constant 1.500000e-01 : f32
    %9 = vector.broadcast %cst_6 : f32 to vector<2x32xf32>
    %10 = arith.mulf %8, %9 : vector<2x32xf32>
    %11 = arith.addf %7, %10 : vector<2x32xf32>
    %c0_7 = arith.constant 0 : index
    %c96 = arith.constant 96 : index
    %12 = vector.load %arg2[%c0_7, %c96] : memref<2x320xf32, #tpu.memory_space<vmem>>, vector<2x32xf32>
    %cst_8 = arith.constant 1.300000e-01 : f32
    %13 = vector.broadcast %cst_8 : f32 to vector<2x32xf32>
    %14 = arith.mulf %12, %13 : vector<2x32xf32>
    %15 = arith.addf %11, %14 : vector<2x32xf32>
    %c0_9 = arith.constant 0 : index
    %c128 = arith.constant 128 : index
    %16 = vector.load %arg2[%c0_9, %c128] : memref<2x320xf32, #tpu.memory_space<vmem>>, vector<2x32xf32>
    %cst_10 = arith.constant 1.100000e-01 : f32
    %17 = vector.broadcast %cst_10 : f32 to vector<2x32xf32>
    %18 = arith.mulf %16, %17 : vector<2x32xf32>
    %19 = arith.addf %15, %18 : vector<2x32xf32>
    %c0_11 = arith.constant 0 : index
    %c160 = arith.constant 160 : index
    %20 = vector.load %arg2[%c0_11, %c160] : memref<2x320xf32, #tpu.memory_space<vmem>>, vector<2x32xf32>
    %cst_12 = arith.constant 9.000000e-02 : f32
    %21 = vector.broadcast %cst_12 : f32 to vector<2x32xf32>
    %22 = arith.mulf %20, %21 : vector<2x32xf32>
    %23 = arith.addf %19, %22 : vector<2x32xf32>
    %c0_13 = arith.constant 0 : index
    %c192 = arith.constant 192 : index
    %24 = vector.load %arg2[%c0_13, %c192] : memref<2x320xf32, #tpu.memory_space<vmem>>, vector<2x32xf32>
    %cst_14 = arith.constant 7.000000e-02 : f32
    %25 = vector.broadcast %cst_14 : f32 to vector<2x32xf32>
    %26 = arith.mulf %24, %25 : vector<2x32xf32>
    %27 = arith.addf %23, %26 : vector<2x32xf32>
    %c0_15 = arith.constant 0 : index
    %c224 = arith.constant 224 : index
    %28 = vector.load %arg2[%c0_15, %c224] : memref<2x320xf32, #tpu.memory_space<vmem>>, vector<2x32xf32>
    %cst_16 = arith.constant 5.000000e-02 : f32
    %29 = vector.broadcast %cst_16 : f32 to vector<2x32xf32>
    %30 = arith.mulf %28, %29 : vector<2x32xf32>
    %31 = arith.addf %27, %30 : vector<2x32xf32>
    %c0_17 = arith.constant 0 : index
    %c256 = arith.constant 256 : index
    %32 = vector.load %arg2[%c0_17, %c256] : memref<2x320xf32, #tpu.memory_space<vmem>>, vector<2x32xf32>
    %cst_18 = arith.constant 3.000000e-02 : f32
    %33 = vector.broadcast %cst_18 : f32 to vector<2x32xf32>
    %34 = arith.mulf %32, %33 : vector<2x32xf32>
    %35 = arith.addf %31, %34 : vector<2x32xf32>
    %c0_19 = arith.constant 0 : index
    %c288 = arith.constant 288 : index
    %36 = vector.load %arg2[%c0_19, %c288] : memref<2x320xf32, #tpu.memory_space<vmem>>, vector<2x32xf32>
    %cst_20 = arith.constant 0.00999999977 : f32
    %37 = vector.broadcast %cst_20 : f32 to vector<2x32xf32>
    %38 = arith.mulf %36, %37 : vector<2x32xf32>
    %39 = arith.addf %35, %38 : vector<2x32xf32>
    %40 = arith.mulf %0, %39 : vector<2x32xf32>
    %41 = tpu.concatenate %0, %40, %39 in 1 : vector<2x32xf32>, vector<2x32xf32>, vector<2x32xf32> -> vector<2x96xf32>
    %c0_21 = arith.constant 0 : index
    %c0_22 = arith.constant 0 : index
    %42 = vector.load %arg3[%c0_21, %c0_22] : memref<2x96xf32, #tpu.memory_space<vmem>>, vector<2x96xf32>
    tpu.vector_store %arg3[%c0_21, %c0_22], %41 {strides = array<i32>} : memref<2x96xf32, #tpu.memory_space<vmem>>, vector<2x96xf32>,
    return
  }
  func.func @transform_0(%arg0: i32) -> (i32, i32) {
    %c0_i32 = arith.constant 0 : i32
    %c0_i32_0 = arith.constant 0 : i32
    return %arg0, %c0_i32 : i32, i32
  }
  func.func @transform_1(%arg0: i32) -> (i32, i32) {
    %c0_i32 = arith.constant 0 : i32
    %c0_i32_0 = arith.constant 0 : i32
    return %arg0, %c0_i32 : i32, i32
  }
  func.func @transform_2(%arg0: i32) -> (i32, i32) {
    %c0_i32 = arith.constant 0 : i32
    %c0_i32_0 = arith.constant 0 : i32
    return %arg0, %c0_i32 : i32, i32
  }
}

</mosaic_0001>

<llo_original>
// kernel: tpu_custom_call.1
$region0: #{tpu_custom_call.1}
  #allocation0 [shape = 'u32[]', space=smem, size = 0x4, offset = 0x4, fixed_abs, tag = 'smem constant byte address 0x4 - core index']
  #allocation1 [shape = 'u32[144,128]{1,0:T(1,128)}', space=vmem, size = 0x12000, scoped, tag = 'internal scratch']
  %s0 = inlined_call_operand.hbm [shape: f32[2,32], index: 0, kind: input, shape index: {}]
  %s1 = inlined_call_operand.hbm [shape: f32[2,320], index: 1, kind: input, shape index: {}]
  %s2 = inlined_call_operand.hbm [shape: f32[2,96], index: 2, kind: output, shape index: {}]
  %s3 = sld [smem:[#allocation0]]
  $region26: #{tpu_custom_call.1} parent=0
    _
  %s5 = ssub.s32 1, %s3
  %s6 = scalar_select 0, %s5, %s3
  $region1: #{tpu_custom_call.1} parent=0
    #allocation2 [shape = 'u8[1024]{0}', space=vmem, size = 0x400, scoped, tag = 'input window, operand 0, single buffered']
    #allocation3 [shape = 's32[1]{0}', space=sflag, size = 0x4, scoped, tag = 'scoped memory for tpu_custom_call.1']
    #allocation4 [shape = 's32[1]{0}', space=sflag, size = 0x4, scoped, tag = 'scoped memory for tpu_custom_call.1']
    #allocation5 [shape = 'u8[3072]{0}', space=vmem, size = 0xc00, scoped, tag = 'input window, operand 1, single buffered']
    #allocation6 [shape = 's32[1]{0}', space=sflag, size = 0x4, scoped, tag = 'scoped memory for tpu_custom_call.1']
    #allocation7 [shape = 'u8[1024]{0}', space=vmem, size = 0x400, scoped, tag = 'output window, operand 0, single buffered']
    %7 = vsyncpa [#allocation3], 0
    %8 = vsyncpa [#allocation6], 0
    %9 = vsyncpa [#allocation4], 0
    // Predicated region
    $region2: #{tpu_custom_call.1} parent=1 // pred_check
      _
    $region3: #{tpu_custom_call.1} parent=1 // pred_check_branch
      %11 = sbr.rel (0) target = $region5
    $region4: #{tpu_custom_call.1} parent=1 // pred_region
      %s13 = ssub.s32 32, 32
      %14 = vsyncadd [#allocation3], %s13
      %s16 = sshll.u32 [#allocation2], 4
      %s17 = int_to_ptr.vmem [resolvable:$true] %s16
      %19 = dma.hbm_to_vmem [thread:$0]  %s0, 32, %s17, [#allocation3]
    $region5: #{tpu_custom_call.1} parent=1 // pred_fallthru
      _
    // Predicated region
    $region6: #{tpu_custom_call.1} parent=1 // pred_check
      _
    $region7: #{tpu_custom_call.1} parent=1 // pred_check_branch
      %21 = sbr.rel (0) target = $region9
    $region8: #{tpu_custom_call.1} parent=1 // pred_region
      %s23 = ssub.s32 96, 96
      %24 = vsyncadd [#allocation6], %s23
      %s26 = sshll.u32 [#allocation5], 4
      %s27 = int_to_ptr.vmem [resolvable:$true] %s26
      %29 = dma.hbm_to_vmem [thread:$0]  %s1, 96, %s27, [#allocation6]
    $region9: #{tpu_custom_call.1} parent=1 // pred_fallthru
      _
    // Predicated region
    $region10: #{tpu_custom_call.1} parent=1 // pred_check
      _
    $region11: #{tpu_custom_call.1} parent=1 // pred_check_branch
      %31 = sbr.rel (0) target = $region13
    $region12: #{tpu_custom_call.1} parent=1 // pred_region
      %32 = dma.done [#allocation3], 32
    $region13: #{tpu_custom_call.1} parent=1 // pred_fallthru
      _
    // Predicated region
    $region14: #{tpu_custom_call.1} parent=1 // pred_check
      _
    $region15: #{tpu_custom_call.1} parent=1 // pred_check_branch
      %34 = sbr.rel (0) target = $region17
    $region16: #{tpu_custom_call.1} parent=1 // pred_region
      %35 = dma.done [#allocation6], 96
    $region17: #{tpu_custom_call.1} parent=1 // pred_fallthru
      _
    %v36 = vld [vmem:[#allocation2] sm:$0x3]
    %v37 = vld [vmem:[#allocation5] sm:$0x3]
    %v38 = vmul.f32 %v37, 0.19
    %v39 = vmul.f32 %v37, 0.17
    %41 = vrot.lane.b32.xlu0 %v39, 96
    %v42 = vpop.permute.xlu0 %41
    %v44 = vadd.f32 %v38, %v42
    %v45 = vmul.f32 %v37, 0.15
    %47 = vrot.lane.b32.xlu0 %v45, 64
    %v48 = vpop.permute.xlu0 %47
    %v50 = vadd.f32 %v44, %v48
    %v51 = vmul.f32 %v37, 0.13
    %53 = vrot.lane.b32.xlu0 %v51, 32
    %v54 = vpop.permute.xlu0 %53
    %v56 = vadd.f32 %v50, %v54
    %v57 = vld [vmem:[#allocation5 + $0x2] sm:$0x3]
    %v58 = vmul.f32 %v57, 0.11
    %v59 = vadd.f32 %v56, %v58
    %v60 = vmul.f32 %v57, 0.09
    %62 = vrot.lane.b32.xlu0 %v60, 96
    %v63 = vpop.permute.xlu0 %62
    %v65 = vadd.f32 %v59, %v63
    %v66 = vmul.f32 %v57, 0.07
    %68 = vrot.lane.b32.xlu0 %v66, 64
    %v69 = vpop.permute.xlu0 %68
    %v71 = vadd.f32 %v65, %v69
    %v72 = vmul.f32 %v57, 0.05
    %74 = vrot.lane.b32.xlu0 %v72, 32
    %v75 = vpop.permute.xlu0 %74
    %v77 = vadd.f32 %v71, %v75
    %v78 = vld [vmem:[#allocation5 + $0x4] sm:$0x3]
    %v79 = vmul.f32 %v78, 0.03
    %v80 = vadd.f32 %v77, %v79
    %v81 = vmul.f32 %v78, 0.01
    %83 = vrot.lane.b32.xlu0 %v81, 96
    %v84 = vpop.permute.xlu0 %83
    %v86 = vadd.f32 %v80, %v84
    %v87 = vmul.f32 %v36, %v86
    %89 = vrot.lane.b32.xlu0 %v87, 32
    %v90 = vpop.permute.xlu0 %89
    %v94 = vunpack.c.l.s4 1983009808
    %v95 = vunpack.c.0.s8 %v94
    %v96 = vlaneseq
    %v97 = vshrl.u32 %v96, 7
    %v98 = vsub.s32 %v95, %v97
    %v99 = vrot.slane %v86, %v98
    %100 = vrot.lane.b32.xlu0 %v99, 64
    %v101 = vpop.permute.xlu0 %100
    %vm103 = vcmask 261120
    %v104 = vsel %vm103, %v36, %v90
    %vm105 = vcmask 523264
    %v106 = vsel %vm105, %v104, %v101
    %vm107 = vcmask 779264
    %108 = vst.msk [vmem:[#allocation7] sm:$0x3] %vm107, %v106
    // Predicated region
    $region18: #{tpu_custom_call.1} parent=1 // pred_check
      _
    $region19: #{tpu_custom_call.1} parent=1 // pred_check_branch
      %110 = sbr.rel (0) target = $region21
    $region20: #{tpu_custom_call.1} parent=1 // pred_region
      %s112 = ssub.s32 32, 32
      %113 = vsyncadd [#allocation4], %s112
      %s115 = sshll.u32 [#allocation7], 4
      %s116 = int_to_ptr.vmem [resolvable:$true] %s115
      %118 = dma.vmem_to_hbm [thread:$0]  %s116, 32, %s2, [#allocation4]
    $region21: #{tpu_custom_call.1} parent=1 // pred_fallthru
      _
    // Predicated region
    $region22: #{tpu_custom_call.1} parent=1 // pred_check
      _
    $region23: #{tpu_custom_call.1} parent=1 // pred_check_branch
      %120 = sbr.rel (0) target = $region25
    $region24: #{tpu_custom_call.1} parent=1 // pred_region
      %121 = dma.done [#allocation4], 32
    $region25: #{tpu_custom_call.1} parent=1 // pred_fallthru
      _
    %122 = vsyncpa [#allocation3], 1
    %123 = vsyncpa [#allocation6], 1
    %124 = vsyncpa [#allocation4], 1

</llo_original>
